<compile_context>
chip_gen: v7x
topology: tpu7x:2x2x1
jax: 0.10.0
libtpu: 0.0.40
codegen_flags: <defaults>
</compile_context>

<pallas_src>
import jax
import jax.numpy as jnp
from jax import lax
from jax.experimental import pallas as pl
from jax.experimental.pallas import tpu as pltpu


_LANE = 128
_MAX_SINGLE_TILE_L = 4096   # if L <= this, use a single L-tile (grid_l == 1)
_TL_MULTI = 2048            # L-tile width when L is tiled (multiple of 128)


def _cdiv(a: int, b: int) -> int:
    return -(-a // b)


def _sublane_multiple(itemsize: int) -> int:
    # f32 -> 8, bf16/f16 -> 16, 8-bit -> 32
    return 8 * max(1, 4 // itemsize)


def _vmem_caps():
    """(target input-tile bytes, vmem_limit cap) based on physical VMEM."""
    try:
        info = pltpu.get_tpu_info()
        cap = int(getattr(info, "vmem_capacity_bytes", 64 << 20))
    except Exception:
        cap = 64 << 20  # conservative (v7x-sized) fallback
    if cap >= (100 << 20):          # v5e / v6e: 128 MiB physical VMEM
        return 16 << 20, 100 << 20
    return 8 << 20, 56 << 20        # v7x: 64 MiB per TC, leave Mosaic headroom


def _choose_tr(r: int, tl: int, itemsize: int, target_bytes: int) -> int:
    sub = _sublane_multiple(itemsize)
    tr = max(1, target_bytes // max(1, tl * itemsize))
    if r >= 2 * sub:
        # keep at least 2 row tiles so the megacore can split the row axis
        tr = min(tr, max(sub, (_cdiv(r, 2) // sub) * sub))
    if tr >= r:
        return r
    return max(sub, (tr // sub) * sub)


def _write_out(o_ref, mx_f32, mean_f32):
    """Single full-block store of the (TR, 2) [max, mean] slab."""
    col = lax.broadcasted_iota(jnp.int32, o_ref.shape, 1)
    o_ref[...] = jnp.where(col == 0, mx_f32, mean_f32).astype(o_ref.dtype)


def _make_single_tile_kernel(*, l_total: int):
    """grid = (grid_r,), block (TR, L): reduce straight into o_ref, no scratch."""
    inv_l = 1.0 / float(l_total)
    n_full = l_total // _LANE
    tail = l_total % _LANE

    def kernel(x_ref, o_ref):
        if n_full == 0:
            # L < 128: the block is tiny; reduce it directly.
            x = x_ref[...]
            mx = jnp.max(x, axis=-1, keepdims=True).astype(jnp.float32)
            sm = jnp.sum(x.astype(jnp.float32), axis=-1, keepdims=True)
        else:
            # Stream 128-lane chunks; fold with elementwise (VPU) ops only.
            pmax = x_ref[:, 0:_LANE]                       # native dtype (max is exact)
            psum = pmax.astype(jnp.float32)
            for k in range(1, n_full):
                c = x_ref[:, k * _LANE:(k + 1) * _LANE]
                pmax = jnp.maximum(pmax, c)
                psum = psum + c.astype(jnp.float32)
            mx = jnp.max(pmax, axis=-1, keepdims=True).astype(jnp.float32)
            sm = jnp.sum(psum, axis=-1, keepdims=True)
            if tail:
                # Narrow tail slice (no mask, no OOB read).
                t = x_ref[:, n_full * _LANE:l_total]
                mx = jnp.maximum(mx, jnp.max(t, axis=-1, keepdims=True).astype(jnp.float32))
                sm = sm + jnp.sum(t.astype(jnp.float32), axis=-1, keepdims=True)
        _write_out(o_ref, mx, sm * inv_l)

    return kernel


def _make_multi_tile_kernel(*, l_total: int, tl: int, grid_l: int):
    """grid = (grid_r, grid_l): stream chunks into (TR, 128) scratch accumulators."""
    inv_l = 1.0 / float(l_total)
    last = grid_l - 1
    chunks_per_tile = tl // _LANE
    rem = l_total - last * tl              # valid length in the last tile, 1..tl
    n_full_last = rem // _LANE
    tail = rem % _LANE
    need_mask = rem != tl                  # last tile differs from the full tiles

    def kernel(x_ref, o_ref, max_acc, sum_acc):
        li = pl.program_id(1)

        @pl.when(li == 0)
        def _init():
            max_acc[...] = jnp.full_like(max_acc, -jnp.inf)
            sum_acc[...] = jnp.zeros_like(sum_acc)

        def accum_chunk(k):
            c = x_ref[:, k * _LANE:(k + 1) * _LANE]
            max_acc[...] = jnp.maximum(max_acc[...], c)
            sum_acc[...] = sum_acc[...] + c.astype(jnp.float32)

        def accum_full_tile():
            for k in range(chunks_per_tile):
                accum_chunk(k)

        def accum_last_tile():
            for k in range(n_full_last):
                accum_chunk(k)
            if tail:
                # Only the single straddling chunk is masked; chunks beyond the
                # logical extent are skipped entirely.
                off = n_full_last * _LANE
                c = x_ref[:, off:off + _LANE]
                lane_pos = lax.broadcasted_iota(jnp.int32, (1, _LANE), 1)
                valid = lane_pos < tail
                neg_inf = jnp.asarray(-jnp.inf, dtype=c.dtype)
                max_acc[...] = jnp.maximum(max_acc[...], jnp.where(valid, c, neg_inf))
                sum_acc[...] = sum_acc[...] + jnp.where(valid, c.astype(jnp.float32), 0.0)

        if need_mask:
            @pl.when(li != last)
            def _():
                accum_full_tile()

            @pl.when(li == last)
            def _():
                accum_last_tile()
        else:
            accum_full_tile()

        @pl.when(li == last)
        def _finalize():
            mx = jnp.max(max_acc[...], axis=-1, keepdims=True).astype(jnp.float32)
            mean = jnp.sum(sum_acc[...], axis=-1, keepdims=True) * inv_l
            _write_out(o_ref, mx, mean)

    return kernel


def _gacp_pooled_rows(x2d: jax.Array) -> jax.Array:
    """Core kernel call: x2d (R, L) -> (R, 2) with [:, 0]=max, [:, 1]=mean."""
    r, l = x2d.shape
    dtype = x2d.dtype
    if not jnp.issubdtype(dtype, jnp.floating):
        raise ValueError("adaptive_concat_pool1d kernel requires floating-point input")
    itemsize = jnp.dtype(dtype).itemsize
    target_bytes, vmem_cap_limit = _vmem_caps()

    if l <= _MAX_SINGLE_TILE_L:
        tl, grid_l = l, 1
    else:
        tl, grid_l = _TL_MULTI, _cdiv(l, _TL_MULTI)

    tr = _choose_tr(r, tl, itemsize, target_bytes)
    grid_r = _cdiv(r, tr)

    # Explicit VMEM accounting: double-buffered input + scratch + output + chunk temps.
    in_block = tr * tl * itemsize
    out_block = tr * 2 * itemsize
    scratch_bytes = tr * _LANE * (itemsize + 4) if grid_l > 1 else 0
    tmp_bytes = 4 * tr * _LANE * 4
    if grid_l == 1 and l < _LANE:
        tmp_bytes += 2 * tr * tl * 4          # small-L direct path materializes the tile
    vmem_budget = 2 * in_block + scratch_bytes + 2 * out_block + tmp_bytes + (2 << 20)
    vmem_limit = int(min(max(vmem_budget, 32 << 20), vmem_cap_limit))

    cost = pl.CostEstimate(
        flops=2 * r * l,
        transcendentals=0,
        bytes_accessed=r * l * itemsize + r * 2 * itemsize,
    )

    out_shape = jax.ShapeDtypeStruct((r, 2), dtype)

    if grid_l == 1:
        kernel = _make_single_tile_kernel(l_total=l)
        grid_spec = pltpu.PrefetchScalarGridSpec(
            num_scalar_prefetch=0,
            grid=(grid_r,),
            in_specs=[pl.BlockSpec((tr, tl), lambda i: (i, 0))],
            out_specs=pl.BlockSpec((tr, 2), lambda i: (i, 0)),
        )
        dims = ("parallel",)
    else:
        kernel = _make_multi_tile_kernel(l_total=l, tl=tl, grid_l=grid_l)
        grid_spec = pltpu.PrefetchScalarGridSpec(
            num_scalar_prefetch=0,
            grid=(grid_r, grid_l),
            in_specs=[pl.BlockSpec((tr, tl), lambda i, li: (i, li))],
            out_specs=pl.BlockSpec((tr, 2), lambda i, li: (i, 0)),
            scratch_shapes=[
                pltpu.VMEM((tr, _LANE), dtype),        # running max (native dtype, exact)
                pltpu.VMEM((tr, _LANE), jnp.float32),  # running sum (f32)
            ],
        )
        dims = ("parallel", "arbitrary")

    return pl.pallas_call(
        kernel,
        out_shape=out_shape,
        grid_spec=grid_spec,
        compiler_params=pltpu.CompilerParams(
            dimension_semantics=dims,
            vmem_limit_bytes=vmem_limit,
        ),
        cost_estimate=cost,
    )(x2d)


def _gacp_pooled(x: jax.Array) -> jax.Array:
    """x (N, C, L) -> (N, 2, C) with [:, 0, :]=max and [:, 1, :]=mean."""
    n, c, l = x.shape
    pooled = _gacp_pooled_rows(x.reshape(n * c, l))          # (N*C, 2)
    return jnp.transpose(pooled.reshape(n, c, 2), (0, 2, 1))  # (N, 2, C)


def adaptive_concat_pool1d(x: jax.Array) -> jax.Array:
    """AdaptiveConcatPool1d(size=1): (N, C, L) -> (N, 2*C, 1)  [max half, then avg half]."""
    n, c, _ = x.shape
    return _gacp_pooled(x).reshape(n, 2 * c, 1)


def gacp1d(x: jax.Array) -> jax.Array:
    """Global AdaptiveConcatPool1d(size=1) + flatten of the trailing singleton: (N, C, L) -> (N, 2*C)."""
    n, c, _ = x.shape
    return _gacp_pooled(x).reshape(n, 2 * c)


def gacp1d_reference(x: jax.Array) -> jax.Array:
    mx = jnp.max(x, axis=-1)
    av = jnp.mean(x, axis=-1)
    return jnp.concatenate([mx, av], axis=1)


if __name__ == "__main__":
    key = jax.random.PRNGKey(0)

    # Small shape consistent with a 1-D conv feature map: (batch=2, channels=4, length=16).
    x = jax.random.normal(key, (2, 4, 16), dtype=jnp.float32)
    ref = gacp1d_reference(x)
    out = jax.block_until_ready(gacp1d(x))
    assert out.shape == (2, 8), out.shape
    assert jnp.allclose(out, ref, atol=1e-5, rtol=1e-5), "mismatch vs reference (small)"

    # Module-shaped output (N, 2*C, 1), exactly as the PyTorch forward returns.
    out3 = jax.block_until_ready(adaptive_concat_pool1d(x))
    assert out3.shape == (2, 8, 1), out3.shape
    assert jnp.allclose(out3[..., 0], ref, atol=1e-5, rtol=1e-5), "module-shape mismatch"

    # Single L-tile path with lane chunks + a non-128 tail (L=300) and a row-remainder
    # block (R=21, TR=8 -> last block has 5 valid rows).
    x1 = jax.random.normal(jax.random.PRNGKey(1), (3, 7, 300), dtype=jnp.float32)
    out1 = jax.block_until_ready(gacp1d(x1))
    assert jnp.allclose(out1, gacp1d_reference(x1), atol=1e-4, rtol=1e-4), "mismatch (single-tile)"

    # Multi L-tile path with a masked remainder (4500 = 2*2048 + 404, tail=20) and a
    # row remainder (R=30, TR=8).
    x2 = jax.random.normal(jax.random.PRNGKey(2), (3, 10, 4500), dtype=jnp.float32)
    out2 = jax.block_until_ready(gacp1d(x2))
    assert jnp.allclose(out2, gacp1d_reference(x2), atol=1e-4, rtol=1e-4), "mismatch (multi-tile)"

    # bf16 input exercising the native-dtype max path + f32 sum accumulation.
    xb = jax.random.normal(jax.random.PRNGKey(3), (2, 4, 4500), dtype=jnp.bfloat16)
    outb = jax.block_until_ready(gacp1d(xb))
    refb = gacp1d_reference(xb.astype(jnp.float32)).astype(jnp.bfloat16)
    assert jnp.allclose(outb.astype(jnp.float32), refb.astype(jnp.float32),
                        atol=2e-2, rtol=2e-2), "mismatch (bf16)"

    print("KERNEL_OK")
</pallas_src>

<mosaic_0001>
module attributes {stable_mosaic.version = 11 : i64} {
  func.func @kernel(%arg0: i32, %arg1: memref<8x16xf32, #tpu.memory_space<vmem>>, %arg2: memref<8x2xf32, #tpu.memory_space<vmem>>) attributes {dimension_semantics = [#tpu.dimension_semantics<parallel>], iteration_bounds = array<i64: 1>, scalar_prefetch = 0 : i64, scratch_operands = 0 : i64, tpu.core_type = #tpu.core_type<tc>, window_params = [{transform_indices = @transform_0, window_bounds = array<i64: 8, 16>}, {transform_indices = @transform_1, window_bounds = array<i64: 8, 2>}]} {
    %c0 = arith.constant 0 : index
    %c0_0 = arith.constant 0 : index
    %0 = vector.load %arg1[%c0, %c0_0] : memref<8x16xf32, #tpu.memory_space<vmem>>, vector<8x16xf32>
    %cst = arith.constant dense<0xFF800000> : vector<8xf32>
    %1 = vector.multi_reduction <maximumf>, %0, %cst [1] : vector<8x16xf32> to vector<8xf32>
    %2 = vector.shape_cast %1 : vector<8xf32> to vector<8x1xf32>
    %cst_1 = arith.constant dense<0.000000e+00> : vector<8xf32>
    %3 = vector.multi_reduction <add>, %0, %cst_1 [1] : vector<8x16xf32> to vector<8xf32>
    %4 = vector.shape_cast %3 : vector<8xf32> to vector<8x1xf32>
    %cst_2 = arith.constant 6.250000e-02 : f32
    %5 = vector.broadcast %cst_2 : f32 to vector<8x1xf32>
    %6 = arith.mulf %4, %5 : vector<8x1xf32>
    %7 = tpu.iota {dimensions = array<i32: 1>} : vector<8x2xi32>
    %c0_i32 = arith.constant 0 : i32
    %8 = vector.broadcast %c0_i32 : i32 to vector<8x2xi32>
    %9 = arith.cmpi eq, %7, %8 : vector<8x2xi32>
    %10 = vector.shape_cast %2 : vector<8x1xf32> to vector<8x1xf32>
    %11 = vector.broadcast %10 : vector<8x1xf32> to vector<8x2xf32>
    %12 = vector.shape_cast %6 : vector<8x1xf32> to vector<8x1xf32>
    %13 = vector.broadcast %12 : vector<8x1xf32> to vector<8x2xf32>
    %14 = arith.select %9, %11, %13 : vector<8x2xi1>, vector<8x2xf32>
    %c0_3 = arith.constant 0 : index
    %c0_4 = arith.constant 0 : index
    %15 = vector.load %arg2[%c0_3, %c0_4] : memref<8x2xf32, #tpu.memory_space<vmem>>, vector<8x2xf32>
    tpu.vector_store %arg2[%c0_3, %c0_4], %14 {strides = array<i32>} : memref<8x2xf32, #tpu.memory_space<vmem>>, vector<8x2xf32>,
    return
  }
  func.func @transform_0(%arg0: i32) -> (i32, i32) {
    %c0_i32 = arith.constant 0 : i32
    %c0_i32_0 = arith.constant 0 : i32
    return %arg0, %c0_i32 : i32, i32
  }
  func.func @transform_1(%arg0: i32) -> (i32, i32) {
    %c0_i32 = arith.constant 0 : i32
    %c0_i32_0 = arith.constant 0 : i32
    return %arg0, %c0_i32 : i32, i32
  }
}

</mosaic_0001>

<llo_original>
// kernel: tpu_custom_call.1
$region0: #{tpu_custom_call.1}
  #allocation0 [shape = 'u32[]', space=smem, size = 0x4, offset = 0x4, fixed_abs, tag = 'smem constant byte address 0x4 - core index']
  #allocation1 [shape = 'u32[144,128]{1,0:T(1,128)}', space=vmem, size = 0x12000, scoped, tag = 'internal scratch']
  %s0 = inlined_call_operand.hbm [shape: f32[8,16], index: 0, kind: input, shape index: {}]
  %s1 = inlined_call_operand.vmem [shape: f32[8,2], index: 1, kind: output, shape index: {}]
  %s2 = sld [smem:[#allocation0]]
  $region18: #{tpu_custom_call.1} parent=0
    _
  %s4 = ssub.s32 1, %s2
  %s5 = scalar_select 0, %s4, %s2
  $region1: #{tpu_custom_call.1} parent=0
    #allocation2 [shape = 'u8[4096]{0}', space=vmem, size = 0x1000, scoped, tag = 'input window, operand 0, single buffered']
    #allocation3 [shape = 's32[1]{0}', space=sflag, size = 0x4, scoped, tag = 'scoped memory for tpu_custom_call.1']
    %6 = vsyncpa [#allocation3], 0
    // Predicated region
    $region2: #{tpu_custom_call.1} parent=1 // pred_check
      _
    $region3: #{tpu_custom_call.1} parent=1 // pred_check_branch
      %8 = sbr.rel (0) target = $region5
    $region4: #{tpu_custom_call.1} parent=1 // pred_region
      %s10 = ssub.s32 128, 128
      %11 = vsyncadd [#allocation3], %s10
      %s13 = sshll.u32 [#allocation2], 4
      %s14 = int_to_ptr.vmem [resolvable:$true] %s13
      %16 = dma.hbm_to_vmem [thread:$0]  %s0, 128, %s14, [#allocation3]
    $region5: #{tpu_custom_call.1} parent=1 // pred_fallthru
      _
    // Predicated region
    $region6: #{tpu_custom_call.1} parent=1 // pred_check
      _
    $region7: #{tpu_custom_call.1} parent=1 // pred_check_branch
      %18 = sbr.rel (0) target = $region9
    $region8: #{tpu_custom_call.1} parent=1 // pred_region
      %19 = dma.done [#allocation3], 128
    $region9: #{tpu_custom_call.1} parent=1 // pred_fallthru
      _
    %v20 = vld [vmem:[#allocation2] sm:$0xff]
    %vm21 = vcmask 130048
    %v22 = vsel %vm21, %v20, -inf
    %23 = vmax.xlane.f32.xlu0 %v22
    %v24 = vpop.xlane.xlu0 %23
    %v25 = vsel %vm21, %v20, 0.0
    %26 = vadd.xlane.f32.xlu0 %v25
    %v27 = vpop.xlane.xlu0 %26
    %v28 = vmul.f32 %v27, 0.0625
    %v29 = vlaneseq
    %v30 = vand.u32 %v29, 127
    %vm31 = vcmp.eq.s32.totalorder %v30, 0
    %v32 = vsel %vm31, %v24, %v28
    %vm33 = vcmask 15360
    %34 = vst.msk [vmem:[%s1] sm:$0xff] %vm33, %v32
    // Predicated region
    $region10: #{tpu_custom_call.1} parent=1 // pred_check
      _
    $region11: #{tpu_custom_call.1} parent=1 // pred_check_branch
      %36 = sbr.rel (0) target = $region13
    $region12: #{tpu_custom_call.1} parent=1 // pred_region
      _
    $region13: #{tpu_custom_call.1} parent=1 // pred_fallthru
      _
    // Predicated region
    $region14: #{tpu_custom_call.1} parent=1 // pred_check
      _
    $region15: #{tpu_custom_call.1} parent=1 // pred_check_branch
      %38 = sbr.rel (0) target = $region17
    $region16: #{tpu_custom_call.1} parent=1 // pred_region
      _
    $region17: #{tpu_custom_call.1} parent=1 // pred_fallthru
      _
    %39 = vsyncpa [#allocation3], 1

</llo_original>
